<compile_context>
chip_gen: v7x
topology: tpu7x:2x2x1
jax: 0.10.0
libtpu: 0.0.40
codegen_flags: <defaults>
</compile_context>

<pallas_src>
import jax
import jax.numpy as jnp
from jax import lax
from jax.experimental import pallas as pl
from jax.experimental.pallas import tpu as pltpu


def _round_up(n, m):
    return ((n + m - 1) // m) * m


def _make_center_loss_kernel(batch, tile_b):
    """Builds the kernel body. `batch` (true batch size) and `tile_b` are static."""

    def kernel(labels_ref,    # SMEM (B_pad,) int32      -- scalar prefetch
               x_ref,         # VMEM (tile_b, D)         -- auto-pipelined batch tile
               centers_ref,   # ANY/HBM (C, D)           -- raw ref, manual DMA gather
               out_ref,       # VMEM (1, 128) f32        -- per-tile partial sum (lane-dense)
               gathered_ref,  # VMEM (tile_b, D) scratch -- gathered center rows
               sem):          # DMA semaphore
        i = pl.program_id(0)
        base = i * tile_b

        # Gather the matching center row for every sample in this batch tile
        # with small HBM -> VMEM DMAs (only B*D bytes of centers traffic total).
        @pl.loop(0, tile_b)
        def _(r):
            lbl = labels_ref[base + r]
            pltpu.make_async_copy(
                centers_ref.at[pl.ds(lbl, 1)],
                gathered_ref.at[pl.ds(r, 1)],
                sem,
            ).start()

        @pl.loop(0, tile_b)
        def _(r):
            pltpu.make_async_copy(
                centers_ref.at[pl.ds(0, 1)],
                gathered_ref.at[pl.ds(r, 1)],
                sem,
            ).wait()

        x = x_ref[...].astype(jnp.float32)
        cg = gathered_ref[...].astype(jnp.float32)
        diff = x - cg
        # Per-sample squared distance, clamped exactly like the PyTorch code.
        d = jnp.sum(diff * diff, axis=1, keepdims=True)          # (tile_b, 1)
        d = jnp.clip(d, 1e-12, 1e12)
        # Mask out padded rows (batch padded up to a multiple of tile_b).
        row = base + lax.broadcasted_iota(jnp.int32, (tile_b, 1), 0)
        d = jnp.where(row < batch, d, 0.0)
        partial = jnp.sum(d)
        # Lane-dense partial-sum row for this batch tile.
        out_ref[...] = jnp.full((1, 128), partial, dtype=jnp.float32)

    return kernel


def center_loss(x, centers, labels, *, tile_b=128):
    """Pallas CenterLoss forward.

    Args:
      x:       (batch, feat_dim) features.
      centers: (num_classes, feat_dim) class centers (parameter).
      labels:  (batch,) integer class labels.
    Returns:
      scalar float32 loss matching the PyTorch forward (including the clamp of
      masked-out entries up to 1e-12).
    """
    B, D = x.shape
    C, Dc = centers.shape
    assert D == Dc

    tb = tile_b if B >= tile_b else _round_up(B, 8)
    b_pad = _round_up(B, tb)
    num_tiles = b_pad // tb

    labels_i32 = labels.astype(jnp.int32)
    if b_pad != B:
        x = jnp.pad(x, ((0, b_pad - B), (0, 0)))
        labels_i32 = jnp.pad(labels_i32, (0, b_pad - B))

    kernel = _make_center_loss_kernel(B, tb)

    out = pl.pallas_call(
        kernel,
        out_shape=jax.ShapeDtypeStruct((1, num_tiles * 128), jnp.float32),
        grid_spec=pltpu.PrefetchScalarGridSpec(
            num_scalar_prefetch=1,
            grid=(num_tiles,),
            in_specs=[
                pl.BlockSpec((tb, D), lambda i, lbl: (i, 0)),   # x batch tile (auto-pipelined)
                pl.BlockSpec(memory_space=pl.ANY),              # centers stay in HBM
            ],
            out_specs=pl.BlockSpec((1, 128), lambda i, lbl: (0, i)),
            scratch_shapes=[
                pltpu.VMEM((tb, D), centers.dtype),
                pltpu.SemaphoreType.DMA(()),
            ],
        ),
        compiler_params=pltpu.CompilerParams(
            dimension_semantics=("parallel",),
            vmem_limit_bytes=32 * 1024 * 1024,
        ),
    )(labels_i32, x, centers)

    partials = out[0].reshape(num_tiles, 128)[:, 0]
    # PyTorch clamps the masked-out zeros up to 1e-12 before summing:
    # exactly (C - 1) * 1e-12 extra per sample.
    return jnp.sum(partials) / jnp.float32(B) + jnp.float32((C - 1) * 1e-12)


def _reference_center_loss(x, centers, labels):
    # Pure-JAX reference mirroring the PyTorch forward exactly.
    B = x.shape[0]
    C = centers.shape[0]
    xf = x.astype(jnp.float32)
    cf = centers.astype(jnp.float32)
    distmat = (
        jnp.sum(xf ** 2, axis=1, keepdims=True)
        + jnp.sum(cf ** 2, axis=1, keepdims=True).T
        - 2.0 * (xf @ cf.T)
    )
    mask = (labels[:, None] == jnp.arange(C)[None, :]).astype(jnp.float32)
    dist = jnp.clip(distmat * mask, 1e-12, 1e12)
    return jnp.sum(dist) / B


if __name__ == "__main__":
    # Small shapes consistent with the module (num_classes, feat_dim scaled down).
    batch = 8
    num_classes = 16
    feat_dim = 32

    key = jax.random.PRNGKey(0)
    k_x, k_c, k_l = jax.random.split(key, 3)

    # Deterministic "parameter" init: centers ~ N(0, 1), like torch.randn.
    centers = jax.random.normal(k_c, (num_classes, feat_dim), dtype=jnp.float32)
    x = jax.random.normal(k_x, (batch, feat_dim), dtype=jnp.float32)
    labels = jax.random.randint(k_l, (batch,), 0, num_classes, dtype=jnp.int32)

    loss = center_loss(x, centers, labels)
    jax.block_until_ready(loss)

    ref = _reference_center_loss(x, centers, labels)
    assert jnp.allclose(loss, ref, rtol=1e-4, atol=1e-4), (loss, ref)

    print("KERNEL_OK")
</pallas_src>

<mosaic_0001>
module attributes {stable_mosaic.version = 11 : i64} {
  func.func @kernel(%arg0: i32, %arg1: memref<8xi32, #tpu.memory_space<smem>>, %arg2: memref<8x32xf32, #tpu.memory_space<vmem>>, %arg3: memref<16x32xf32, #tpu.memory_space<any>>, %arg4: memref<1x128xf32, #tpu.memory_space<vmem>>, %arg5: memref<8x32xf32, #tpu.memory_space<vmem>>, %arg6: memref<!tpu.dma_semaphore, #tpu.memory_space<semaphore_mem>>) attributes {dimension_semantics = [#tpu.dimension_semantics<parallel>], iteration_bounds = array<i64: 1>, scalar_prefetch = 1 : i64, scratch_operands = 2 : i64, tpu.core_type = #tpu.core_type<tc>, window_params = [{transform_indices = @transform_0, window_bounds = array<i64: 8, 32>}, {}, {transform_indices = @transform_2, window_bounds = array<i64: 1, 128>}]} {
    %c8_i32 = arith.constant 8 : i32
    %0 = arith.muli %arg0, %c8_i32 : i32
    %c0_i32 = arith.constant 0 : i32
    %c8_i32_0 = arith.constant 8 : i32
    %1 = arith.addi %c0_i32, %c8_i32_0 : i32
    %c1_i32 = arith.constant 1 : i32
    scf.for %arg7 = %c0_i32 to %1 step %c1_i32  : i32 {
      %c1_i32_16 = arith.constant 1 : i32
      %26 = arith.muli %arg7, %c1_i32_16 : i32
      %c0_i32_17 = arith.constant 0 : i32
      %27 = arith.addi %c0_i32_17, %26 : i32
      %28 = arith.addi %0, %27 : i32
      %29 = arith.index_cast %28 : i32 to index
      %30 = memref.load %arg1[%29] : memref<8xi32, #tpu.memory_space<smem>>
      %c0_i32_18 = arith.constant 0 : i32
      %31 = tpu.memref_slice %arg3[%30, %c0_i32_18] : memref<16x32xf32, #tpu.memory_space<any>> -> memref<1x32xf32, #tpu.memory_space<any>>
      %c0_i32_19 = arith.constant 0 : i32
      %32 = tpu.memref_slice %arg5[%27, %c0_i32_19] : memref<8x32xf32, #tpu.memory_space<vmem>> -> memref<1x32xf32, #tpu.memory_space<vmem>>
      tpu.enqueue_dma source(%31 : memref<1x32xf32, #tpu.memory_space<any>>) target(%32 : memref<1x32xf32, #tpu.memory_space<vmem>>) target_semaphore(%arg6 : memref<!tpu.dma_semaphore, #tpu.memory_space<semaphore_mem>>)
    }
    %c8_i32_1 = arith.constant 8 : i32
    %c0_i32_2 = arith.constant 0 : i32
    %c8_i32_3 = arith.constant 8 : i32
    %2 = arith.addi %c0_i32_2, %c8_i32_3 : i32
    %c1_i32_4 = arith.constant 1 : i32
    scf.for %arg7 = %c0_i32_2 to %2 step %c1_i32_4  : i32 {
      %c1_i32_16 = arith.constant 1 : i32
      %26 = arith.muli %arg7, %c1_i32_16 : i32
      %c0_i32_17 = arith.constant 0 : i32
      %27 = arith.addi %c0_i32_17, %26 : i32
      %c0_i32_18 = arith.constant 0 : i32
      %c0_i32_19 = arith.constant 0 : i32
      %28 = tpu.memref_slice %arg3[%c0_i32_18, %c0_i32_19] : memref<16x32xf32, #tpu.memory_space<any>> -> memref<1x32xf32, #tpu.memory_space<any>>
      %c0_i32_20 = arith.constant 0 : i32
      %29 = tpu.memref_slice %arg5[%27, %c0_i32_20] : memref<8x32xf32, #tpu.memory_space<vmem>> -> memref<1x32xf32, #tpu.memory_space<vmem>>
      tpu.wait_dma2 semaphore(%arg6 : memref<!tpu.dma_semaphore, #tpu.memory_space<semaphore_mem>>) src(%28 : memref<1x32xf32, #tpu.memory_space<any>>) dst(%29 : memref<1x32xf32, #tpu.memory_space<vmem>>)
    }
    %c8_i32_5 = arith.constant 8 : i32
    %c0 = arith.constant 0 : index
    %c0_6 = arith.constant 0 : index
    %3 = vector.load %arg2[%c0, %c0_6] : memref<8x32xf32, #tpu.memory_space<vmem>>, vector<8x32xf32>
    %c0_7 = arith.constant 0 : index
    %c0_8 = arith.constant 0 : index
    %4 = vector.load %arg5[%c0_7, %c0_8] : memref<8x32xf32, #tpu.memory_space<vmem>>, vector<8x32xf32>
    %5 = arith.subf %3, %4 : vector<8x32xf32>
    %6 = arith.mulf %5, %5 : vector<8x32xf32>
    %cst = arith.constant dense<0.000000e+00> : vector<8xf32>
    %7 = vector.multi_reduction <add>, %6, %cst [1] : vector<8x32xf32> to vector<8xf32>
    %8 = vector.shape_cast %7 : vector<8xf32> to vector<8x1xf32>
    %cst_9 = arith.constant 9.99999996E-13 : f32
    %cst_10 = arith.constant 9.99999995E+11 : f32
    %9 = vector.broadcast %cst_9 : f32 to vector<8x1xf32>
    %10 = arith.maximumf %9, %8 : vector<8x1xf32>
    %11 = vector.broadcast %cst_10 : f32 to vector<8x1xf32>
    %12 = arith.minimumf %11, %10 : vector<8x1xf32>
    %13 = tpu.iota {dimensions = array<i32: 0>} : vector<8x1xi32>
    %14 = vector.broadcast %0 : i32 to vector<8x1xi32>
    %15 = arith.addi %14, %13 : vector<8x1xi32>
    %c8_i32_11 = arith.constant 8 : i32
    %16 = vector.broadcast %c8_i32_11 : i32 to vector<8x1xi32>
    %17 = arith.cmpi slt, %15, %16 : vector<8x1xi32>
    %cst_12 = arith.constant 0.000000e+00 : f32
    %18 = vector.broadcast %cst_12 : f32 to vector<8x1xf32>
    %19 = arith.select %17, %12, %18 : vector<8x1xi1>, vector<8x1xf32>
    %20 = vector.shape_cast %19 : vector<8x1xf32> to vector<1x8x1xf32>
    %cst_13 = arith.constant dense<0.000000e+00> : vector<1xf32>
    %21 = vector.multi_reduction <add>, %20, %cst_13 [1, 2] : vector<1x8x1xf32> to vector<1xf32>
    %22 = vector.shape_cast %21 : vector<1xf32> to vector<1x1x1xf32>
    %23 = vector.extract %22[0, 0, 0] : f32 from vector<1x1x1xf32>
    %24 = vector.broadcast %23 : f32 to vector<1x128xf32>
    %c0_14 = arith.constant 0 : index
    %c0_15 = arith.constant 0 : index
    %25 = vector.load %arg4[%c0_14, %c0_15] : memref<1x128xf32, #tpu.memory_space<vmem>>, vector<1x128xf32>
    tpu.vector_store %arg4[%c0_14, %c0_15], %24 {strides = array<i32>} : memref<1x128xf32, #tpu.memory_space<vmem>>, vector<1x128xf32>,
    return
  }
  func.func @transform_0(%arg0: i32, %arg1: memref<8xi32, #tpu.memory_space<smem>>) -> (i32, i32) {
    %c0_i32 = arith.constant 0 : i32
    %c0_i32_0 = arith.constant 0 : i32
    return %arg0, %c0_i32 : i32, i32
  }
  func.func @transform_2(%arg0: i32, %arg1: memref<8xi32, #tpu.memory_space<smem>>) -> (i32, i32) {
    %c0_i32 = arith.constant 0 : i32
    %c0_i32_0 = arith.constant 0 : i32
    return %c0_i32, %arg0 : i32, i32
  }
}

</mosaic_0001>

<llo_original>
// kernel: tpu_custom_call.1
$region0: #{tpu_custom_call.1}
  #allocation0 [shape = 'u32[]', space=smem, size = 0x4, offset = 0x4, fixed_abs, tag = 'smem constant byte address 0x4 - core index']
  #allocation1 [shape = 'u32[144,128]{1,0:T(1,128)}', space=vmem, size = 0x12000, scoped, tag = 'internal scratch']
  #allocation2 [shape = 'f32[8,32]{1,0:T(8,128)}', space=vmem, size = 0x1000, scoped, tag = 'scratch operand']
  #allocation3 [shape = 's32[1]{0}', space=sflag, size = 0x4, scoped, tag = 'scratch operand']
  #allocation4 [shape = 's32[1]{0}', space=sflag, size = 0x4, scoped, tag = 'scoped memory for tpu_custom_call.1']
  #allocation5 [shape = 'u8[512]{0}', space=smem, size = 0x200, scoped, tag = 'prefetched SMEM operand 0']
  #allocation10 [shape = 's32[]', space=sflag, size = 0x4, offset = 0, fixed_abs, tag = 'sflag constant byte address 0x0 - dummy sync flag']
  #allocation11 [shape = 's32[]', space=sflag, size = 0x4, offset = 0, fixed_abs, tag = 'sflag constant byte address 0x0 - dummy sync flag']
  #allocation12 [shape = 'u32[]', space=smem, size = 0x4, offset = 0x44, fixed_abs, tag = 'smem constant byte address 0x44 - assertion arg 0']
  #allocation13 [shape = 'u32[]', space=smem, size = 0x4, offset = 0x48, fixed_abs, tag = 'smem constant byte address 0x48 - assertion arg 1']
  %s0 = inlined_call_operand.hbm [shape: s32[8], index: 0, kind: input, shape index: {}]
  %s1 = inlined_call_operand.hbm [shape: f32[8,32], index: 1, kind: input, shape index: {}]
  %s2 = inlined_call_operand.hbm [shape: f32[16,32], index: 2, kind: input, shape index: {}]
  %s3 = inlined_call_operand.hbm [shape: f32[1,128], index: 3, kind: output, shape index: {}]
  %s4 = sld [smem:[#allocation0]]
  $region36: #{tpu_custom_call.1} parent=0
    _
  %s6 = ssub.s32 1, %s4
  %s7 = scalar_select 0, %s6, %s4
  %9 = dma.hbm_to_smem %s0, 16, [#allocation5], [#allocation4]
  %10 = dma.done [#allocation4], 16
  %11 = sfence
  $region1: #{tpu_custom_call.1} parent=0
    #allocation6 [shape = 'u8[4096]{0}', space=vmem, size = 0x1000, scoped, tag = 'input window, operand 1, single buffered']
    #allocation7 [shape = 's32[1]{0}', space=sflag, size = 0x4, scoped, tag = 'scoped memory for tpu_custom_call.1']
    #allocation8 [shape = 's32[1]{0}', space=sflag, size = 0x4, scoped, tag = 'scoped memory for tpu_custom_call.1']
    #allocation9 [shape = 'u8[512]{0}', space=vmem, size = 0x400, scoped, tag = 'output window, operand 0, single buffered']
    %12 = vsyncpa [#allocation7], 0
    %13 = vsyncpa [#allocation8], 0
    // Predicated region
    $region2: #{tpu_custom_call.1} parent=1 // pred_check
      _
    $region3: #{tpu_custom_call.1} parent=1 // pred_check_branch
      %15 = sbr.rel (0) target = $region5
    $region4: #{tpu_custom_call.1} parent=1 // pred_region
      %s17 = ssub.s32 128, 128
      %18 = vsyncadd [#allocation7], %s17
      %s20 = sshll.u32 [#allocation6], 4
      %s21 = int_to_ptr.vmem [resolvable:$true] %s20
      %23 = dma.hbm_to_vmem [thread:$0]  %s1, 128, %s21, [#allocation7]
    $region5: #{tpu_custom_call.1} parent=1 // pred_fallthru
      _
    // Predicated region
    $region6: #{tpu_custom_call.1} parent=1 // pred_check
      _
    $region7: #{tpu_custom_call.1} parent=1 // pred_check_branch
      %25 = sbr.rel (0) target = $region9
    $region8: #{tpu_custom_call.1} parent=1 // pred_region
      %26 = dma.done [#allocation7], 128
    $region9: #{tpu_custom_call.1} parent=1 // pred_fallthru
      _
    %s27 = smul.u32 0, 8
    loop: start=0, step=1, limit=8
    $region10: #{tpu_custom_call.1} parent=1 // loop_pre_header
      _
    $region11: #{tpu_custom_call.1} parent=1 // loop_header
      %s29 = sphi 0, %s33
      %p30 = scmp.ge.s32.totalorder %s29, 8
    $region12: #{tpu_custom_call.1} parent=1 // loop_header_branch
      %32 = sbr.rel (%p30) target = $region16
    $region13: #{tpu_custom_call.1} parent=1 // loop_body
      %s34 = sadd.s32 %s27, %s29
      %s35 = sld [smem:[#allocation5 + %s34]]
      %s36 = smul.addr %s35, 16
      %s37 = scalar_lea.hbm %s2, %s36
      %s38 = scalar_lea.vmem [#allocation2], %s29
      // Predicated region
      $region17: #{tpu_custom_call.1} parent=13 // pred_check
        _
      $region18: #{tpu_custom_call.1} parent=13 // pred_check_branch
        %40 = sbr.rel target = $region20
      $region19: #{tpu_custom_call.1} parent=13 // pred_region
        %41 = sst [smem:[#allocation12]] [#allocation11]
        %42 = sst [smem:[#allocation13]] [#allocation10]
      $region20: #{tpu_custom_call.1} parent=13 // pred_fallthru
        _
      %44 = shalt.err (0)
      %s46 = sshll.u32 %s38, 4
      %s47 = int_to_ptr.vmem [resolvable:$true] %s46
      %49 = dma.hbm_to_vmem [thread:$0]  %s37, 16, %s47, [#allocation3]
    $region14: #{tpu_custom_call.1} parent=1 // loop_footer
      %s33 = sadd.s32 1, %s29
    $region15: #{tpu_custom_call.1} parent=1 // loop_footer_branch
      %28 = sbr.rel target = $region11
    $region16: #{tpu_custom_call.1} parent=1 // loop_exit
      _
    loop: start=0, step=1, limit=8
    $region21: #{tpu_custom_call.1} parent=1 // loop_pre_header
      _
    $region22: #{tpu_custom_call.1} parent=1 // loop_header
      %s51 = sphi 0, %s55
      %p52 = scmp.ge.s32.totalorder %s51, 8
    $region23: #{tpu_custom_call.1} parent=1 // loop_header_branch
      %54 = sbr.rel (%p52) target = $region27
    $region24: #{tpu_custom_call.1} parent=1 // loop_body
      %s56 = smul.u32 1, 1
      %s57 = sshll.u32 %s56, 4
      %58 = dma.done [#allocation3], %s57
    $region25: #{tpu_custom_call.1} parent=1 // loop_footer
      %s55 = sadd.s32 1, %s51
    $region26: #{tpu_custom_call.1} parent=1 // loop_footer_branch
      %50 = sbr.rel target = $region22
    $region27: #{tpu_custom_call.1} parent=1 // loop_exit
      _
    %v59 = vld [vmem:[#allocation6] sm:$0xff]
    %v60 = vld [vmem:[#allocation2] sm:$0xff]
    %v61 = vsub.f32 %v59, %v60
    %v62 = vmul.f32 %v61, %v61
    %vm63 = vcmask 261120
    %v64 = vsel %vm63, %v62, 0.0
    %65 = vadd.xlane.f32.xlu0 %v64
    %v66 = vpop.xlane.xlu0 %65
    %v67 = vmax.f32 %v66, 1e-12
    %v68 = vmin.f32 %v67, 1e+12
    %v69 = vlaneseq
    %v70 = vshrl.u32 %v69, 7
    %v71 = vstv %s27
    %v72 = vadd.s32 %v71, %v70
    %vm73 = vcmp.lt.s32.totalorder %v72, 8
    %v74 = vsel %vm73, %v68, 0.0
    %vm75 = vcmask 7168
    %v76 = vsel %vm75, %v74, 0.0
    %77 = vadd.xlane.f32.xlu0 %v76
    %v78 = vpop.xlane.xlu0 %77
    %v79 = vrot.slane %v78, 4
    %v80 = vadd.f32 %v78, %v79
    %v81 = vrot.slane %v80, 2
    %v82 = vadd.f32 %v80, %v81
    %v83 = vrot.slane %v82, 1
    %v84 = vadd.f32 %v82, %v83
    %s85 = vtos %v84
    %v86 = vstv %s85
    %87 = vst [vmem:[#allocation9] sm:$0x1] %v86
    // Predicated region
    $region28: #{tpu_custom_call.1} parent=1 // pred_check
      _
    $region29: #{tpu_custom_call.1} parent=1 // pred_check_branch
      %89 = sbr.rel (0) target = $region31
    $region30: #{tpu_custom_call.1} parent=1 // pred_region
      %s91 = ssub.s32 16, 16
      %92 = vsyncadd [#allocation8], %s91
      %s94 = sshll.u32 [#allocation9], 4
      %s95 = int_to_ptr.vmem [resolvable:$true] %s94
      %97 = dma.vmem_to_hbm [thread:$0]  %s95, 16, %s3, [#allocation8]
    $region31: #{tpu_custom_call.1} parent=1 // pred_fallthru
      _
    // Predicated region
    $region32: #{tpu_custom_call.1} parent=1 // pred_check
      _
    $region33: #{tpu_custom_call.1} parent=1 // pred_check_branch
      %99 = sbr.rel (0) target = $region35
    $region34: #{tpu_custom_call.1} parent=1 // pred_region
      %100 = dma.done [#allocation8], 16
    $region35: #{tpu_custom_call.1} parent=1 // pred_fallthru
      _
    %101 = vsyncpa [#allocation7], 1
    %102 = vsyncpa [#allocation8], 1
  %103 = vsyncmov [#allocation3]
  %s104 = vpop.sfrf %103
  %p105 = scmp.eq.s32.totalorder %s104, 0
  %p106 = pneg %p105
  %108 = shalt.err (%p106)

</llo_original>
